<compile_context>
chip_gen: v7x
topology: tpu7x:2x2x1
jax: 0.10.0
libtpu: 0.0.40
codegen_flags: <defaults>
</compile_context>

<pallas_src>
import jax
import jax.numpy as jnp
from jax.experimental import pallas as pl
from jax.experimental.pallas import tpu as pltpu


def _elementwise_kernel(x_ref, o_ref):
    x = x_ref[...]
    y = x + 2.0
    y = y * 3.0
    y = y - 1.0
    o_ref[...] = y * 0.25  # exact equivalent of / 4 for binary floats


def _chip_kind():
    try:
        return jax.devices()[0].device_kind.lower()
    except Exception:
        return ""


def _pick_tm(nrows, pack, cap_rows, want_even_grid):
    """Pick a row-block size.

    Preference order: legal (multiple of `pack` or == nrows), <= cap_rows,
    divides nrows evenly, and (on v7x) yields an even grid count so the two
    TensorCores get balanced work.
    """
    cap_rows = max(pack, (cap_rows // pack) * pack)
    need_split = want_even_grid and nrows >= 2 * pack
    if nrows <= cap_rows and not need_split:
        return nrows  # whole array in one block (sublane dim == full dim is legal)

    hi = min(cap_rows, nrows // 2 if need_split else nrows)
    hi = max(pack, (hi // pack) * pack)

    # First choice: a pack-aligned divisor of nrows (no ragged final block),
    # preferring an even grid count when megacore sharding is wanted.
    best_div = None
    t = hi
    while t >= pack:
        if nrows % t == 0:
            g = nrows // t
            if (not want_even_grid) or (g % 2 == 0):
                return t
            if best_div is None:
                best_div = t
        t -= pack
    if best_div is not None:
        return best_div

    # No clean divisor: accept a ragged (masked) final block; on v7x still try
    # to get an even number of blocks for load balance across the two TCs.
    if want_even_grid:
        t = hi
        while t >= pack:
            if pl.cdiv(nrows, t) % 2 == 0:
                return t
            t -= pack
    return hi


def _run(x2d, block, grid, index_map, n, itemsize, dtype):
    return pl.pallas_call(
        _elementwise_kernel,
        out_shape=jax.ShapeDtypeStruct(x2d.shape, dtype),
        grid_spec=pltpu.PrefetchScalarGridSpec(
            num_scalar_prefetch=0,
            grid=grid,
            in_specs=[pl.BlockSpec(block, index_map)],
            out_specs=pl.BlockSpec(block, index_map),
        ),
        compiler_params=pltpu.CompilerParams(
            dimension_semantics=("parallel",),
        ),
        cost_estimate=pl.CostEstimate(
            flops=4 * n,
            transcendentals=0,
            bytes_accessed=2 * n * itemsize,
        ),
    )(x2d)


def pt_module_forward(x):
    """Elementwise ((x+2)*3-1)/4 via a tiled, lane-dense Pallas TPU kernel."""
    orig_shape = x.shape
    dtype = x.dtype
    n = x.size
    if n == 0:
        return x
    itemsize = jnp.dtype(dtype).itemsize

    # Native sublane packing: 8 rows/vreg for 32-bit, 16 for bf16, 32 for int8/fp8.
    pack = 8 * max(1, 4 // itemsize)

    kind = _chip_kind()
    is_v7x = ("v7" in kind) or ("7x" in kind)
    big_vmem = is_v7x or ("v6" in kind)  # 32 MiB default scoped VMEM
    target_block_bytes = (4 if big_vmem else 2) * 1024 * 1024

    flat = x.reshape(-1)

    if n % 128 == 0:
        # Common path: lane-dense 2-D slab, row-blocked grid, zero extra copies.
        ncols = next(c for c in (4096, 2048, 1024, 512, 256, 128) if n % c == 0)
        nrows = n // ncols
        cap_rows = max(pack, target_block_bytes // (ncols * itemsize))
        tm = _pick_tm(nrows, pack, cap_rows, want_even_grid=is_v7x)
        x2d = flat.reshape(nrows, ncols)
        out2d = _run(
            x2d,
            block=(tm, ncols),
            grid=(pl.cdiv(nrows, tm),),
            index_map=lambda i: (i, 0),
            n=n,
            itemsize=itemsize,
            dtype=dtype,
        )
    else:
        # Ragged size (n not a multiple of 128): keep it one row wide (sublane
        # dim == full dim) and tile the lane dim.  The final partial block is
        # masked by Pallas -- no jnp.pad / slice copies, data streamed once.
        tb = max(1024, (target_block_bytes // itemsize // 1024) * 1024)
        if n <= tb:
            tb = n  # whole array in one block (block == full array dims)
        x2d = flat.reshape(1, n)
        out2d = _run(
            x2d,
            block=(1, tb),
            grid=(pl.cdiv(n, tb),),
            index_map=lambda i: (0, i),
            n=n,
            itemsize=itemsize,
            dtype=dtype,
        )

    return out2d.reshape(orig_shape)


if __name__ == "__main__":
    # Primary small input consistent with a generic NCHW tensor forward.
    key = jax.random.PRNGKey(0)
    x = jax.random.normal(key, (2, 4, 16, 16), dtype=jnp.float32)
    out = jax.block_until_ready(pt_module_forward(x))
    ref = ((x + 2.0) * 3.0 - 1.0) / 4.0
    assert out.shape == x.shape and out.dtype == x.dtype
    assert jnp.allclose(out, ref, atol=1e-6, rtol=1e-6)

    # Multi-block lane-dense path (divisible by 128, several row blocks).
    x2 = jax.random.normal(jax.random.PRNGKey(1), (8, 8, 128, 256), dtype=jnp.float32)
    out2 = jax.block_until_ready(pt_module_forward(x2))
    ref2 = ((x2 + 2.0) * 3.0 - 1.0) / 4.0
    assert jnp.allclose(out2, ref2, atol=1e-6, rtol=1e-6)

    # Ragged path (size not divisible by 128): no pad / slice copies.
    x3 = jax.random.normal(jax.random.PRNGKey(2), (5, 7, 13), dtype=jnp.float32)
    out3 = jax.block_until_ready(pt_module_forward(x3))
    ref3 = ((x3 + 2.0) * 3.0 - 1.0) / 4.0
    assert out3.shape == x3.shape
    assert jnp.allclose(out3, ref3, atol=1e-6, rtol=1e-6)

    # bf16 input exercises dtype-aware sublane packing.
    x4 = jax.random.normal(jax.random.PRNGKey(3), (4, 256, 512), dtype=jnp.bfloat16)
    out4 = jax.block_until_ready(pt_module_forward(x4))
    ref4 = ((x4 + 2.0) * 3.0 - 1.0) / 4.0
    assert out4.dtype == jnp.bfloat16
    assert jnp.allclose(out4.astype(jnp.float32), ref4.astype(jnp.float32),
                        atol=2e-2, rtol=2e-2)

    print("KERNEL_OK")
</pallas_src>

<mosaic_0001>
module attributes {stable_mosaic.version = 11 : i64} {
  func.func @_elementwise_kernel(%arg0: i32, %arg1: memref<1x2048xf32, #tpu.memory_space<vmem>>, %arg2: memref<1x2048xf32, #tpu.memory_space<vmem>>) attributes {dimension_semantics = [#tpu.dimension_semantics<parallel>], iteration_bounds = array<i64: 1>, scalar_prefetch = 0 : i64, scratch_operands = 0 : i64, tpu.core_type = #tpu.core_type<tc>, window_params = [{transform_indices = @transform_0, window_bounds = array<i64: 1, 2048>}, {transform_indices = @transform_1, window_bounds = array<i64: 1, 2048>}]} {
    %c0 = arith.constant 0 : index
    %c0_0 = arith.constant 0 : index
    %0 = vector.load %arg1[%c0, %c0_0] : memref<1x2048xf32, #tpu.memory_space<vmem>>, vector<1x2048xf32>
    %cst = arith.constant 2.000000e+00 : f32
    %1 = vector.broadcast %cst : f32 to vector<1x2048xf32>
    %2 = arith.addf %0, %1 : vector<1x2048xf32>
    %cst_1 = arith.constant 3.000000e+00 : f32
    %3 = vector.broadcast %cst_1 : f32 to vector<1x2048xf32>
    %4 = arith.mulf %2, %3 : vector<1x2048xf32>
    %cst_2 = arith.constant 1.000000e+00 : f32
    %5 = vector.broadcast %cst_2 : f32 to vector<1x2048xf32>
    %6 = arith.subf %4, %5 : vector<1x2048xf32>
    %cst_3 = arith.constant 2.500000e-01 : f32
    %7 = vector.broadcast %cst_3 : f32 to vector<1x2048xf32>
    %8 = arith.mulf %6, %7 : vector<1x2048xf32>
    %c0_4 = arith.constant 0 : index
    %c0_5 = arith.constant 0 : index
    %9 = vector.load %arg2[%c0_4, %c0_5] : memref<1x2048xf32, #tpu.memory_space<vmem>>, vector<1x2048xf32>
    tpu.vector_store %arg2[%c0_4, %c0_5], %8 {strides = array<i32>} : memref<1x2048xf32, #tpu.memory_space<vmem>>, vector<1x2048xf32>,
    return
  }
  func.func @transform_0(%arg0: i32) -> (i32, i32) {
    %c0_i32 = arith.constant 0 : i32
    %c0_i32_0 = arith.constant 0 : i32
    return %arg0, %c0_i32 : i32, i32
  }
  func.func @transform_1(%arg0: i32) -> (i32, i32) {
    %c0_i32 = arith.constant 0 : i32
    %c0_i32_0 = arith.constant 0 : i32
    return %arg0, %c0_i32 : i32, i32
  }
}

</mosaic_0001>

<llo_original>
// kernel: tpu_custom_call.1
$region0: #{tpu_custom_call.1}
  #allocation0 [shape = 'u32[]', space=smem, size = 0x4, offset = 0x4, fixed_abs, tag = 'smem constant byte address 0x4 - core index']
  #allocation1 [shape = 'u32[144,128]{1,0:T(1,128)}', space=vmem, size = 0x12000, scoped, tag = 'internal scratch']
  %s0 = inlined_call_operand.hbm [shape: f32[1,2048], index: 0, kind: input, shape index: {}]
  %s1 = inlined_call_operand.hbm [shape: f32[1,2048], index: 1, kind: output, shape index: {}]
  %s2 = sld [smem:[#allocation0]]
  $region18: #{tpu_custom_call.1} parent=0
    _
  %s4 = ssub.s32 1, %s2
  %s5 = scalar_select 0, %s4, %s2
  $region1: #{tpu_custom_call.1} parent=0
    #allocation2 [shape = 'u8[8192]{0}', space=vmem, size = 0x2000, scoped, tag = 'input window, operand 0, single buffered']
    #allocation3 [shape = 's32[1]{0}', space=sflag, size = 0x4, scoped, tag = 'scoped memory for tpu_custom_call.1']
    #allocation4 [shape = 's32[1]{0}', space=sflag, size = 0x4, scoped, tag = 'scoped memory for tpu_custom_call.1']
    #allocation5 [shape = 'u8[8192]{0}', space=vmem, size = 0x2000, scoped, tag = 'output window, operand 0, single buffered']
    %6 = vsyncpa [#allocation3], 0
    %7 = vsyncpa [#allocation4], 0
    // Predicated region
    $region2: #{tpu_custom_call.1} parent=1 // pred_check
      _
    $region3: #{tpu_custom_call.1} parent=1 // pred_check_branch
      %9 = sbr.rel (0) target = $region5
    $region4: #{tpu_custom_call.1} parent=1 // pred_region
      %s11 = ssub.s32 256, 256
      %12 = vsyncadd [#allocation3], %s11
      %s14 = sshll.u32 [#allocation2], 4
      %s15 = int_to_ptr.vmem [resolvable:$true] %s14
      %17 = dma.hbm_to_vmem [thread:$0]  %s0, 256, %s15, [#allocation3]
    $region5: #{tpu_custom_call.1} parent=1 // pred_fallthru
      _
    // Predicated region
    $region6: #{tpu_custom_call.1} parent=1 // pred_check
      _
    $region7: #{tpu_custom_call.1} parent=1 // pred_check_branch
      %19 = sbr.rel (0) target = $region9
    $region8: #{tpu_custom_call.1} parent=1 // pred_region
      %20 = dma.done [#allocation3], 256
    $region9: #{tpu_custom_call.1} parent=1 // pred_fallthru
      _
    %v21 = vld [vmem:[#allocation2] sm:$0xff]
    %v22 = vld [vmem:[#allocation2 + $0x8] sm:$0xff]
    %v23 = vadd.f32 %v21, 2.0
    %v24 = vadd.f32 %v22, 2.0
    %v25 = vmul.f32 %v23, 3.0
    %v26 = vmul.f32 %v24, 3.0
    %v27 = vsub.f32 %v25, 1.0
    %v28 = vsub.f32 %v26, 1.0
    %v29 = vmul.f32 %v27, 0.25
    %v30 = vmul.f32 %v28, 0.25
    %31 = vst [vmem:[#allocation5] sm:$0xff] %v29
    %32 = vst [vmem:[#allocation5 + $0x8] sm:$0xff] %v30
    // Predicated region
    $region10: #{tpu_custom_call.1} parent=1 // pred_check
      _
    $region11: #{tpu_custom_call.1} parent=1 // pred_check_branch
      %34 = sbr.rel (0) target = $region13
    $region12: #{tpu_custom_call.1} parent=1 // pred_region
      %s36 = ssub.s32 256, 256
      %37 = vsyncadd [#allocation4], %s36
      %s39 = sshll.u32 [#allocation5], 4
      %s40 = int_to_ptr.vmem [resolvable:$true] %s39
      %42 = dma.vmem_to_hbm [thread:$0]  %s40, 256, %s1, [#allocation4]
    $region13: #{tpu_custom_call.1} parent=1 // pred_fallthru
      _
    // Predicated region
    $region14: #{tpu_custom_call.1} parent=1 // pred_check
      _
    $region15: #{tpu_custom_call.1} parent=1 // pred_check_branch
      %44 = sbr.rel (0) target = $region17
    $region16: #{tpu_custom_call.1} parent=1 // pred_region
      %45 = dma.done [#allocation4], 256
    $region17: #{tpu_custom_call.1} parent=1 // pred_fallthru
      _
    %46 = vsyncpa [#allocation3], 1
    %47 = vsyncpa [#allocation4], 1

</llo_original>
